<compile_context>
chip_gen: v7x
topology: tpu7x:2x2x1
jax: 0.10.0
libtpu: 0.0.40
codegen_flags: <defaults>
</compile_context>

<pallas_src>
import jax
import jax.numpy as jnp
import numpy as np
from jax.experimental import pallas as pl
from jax.experimental.pallas import tpu as pltpu

# ---- model dims (small, consistent with the module) ----
INPUT_DIM = 16     # vocab size
EMBED_DIM = 32     # embbed_dim
HIDDEN_DIM = 32    # hidden_dim
NUM_LAYERS = 1


def _encoder_kernel(tok_ref,        # scalar-prefetch: token id in SMEM, shape (1,)
                    r_tab_ref,      # (V, H)  sigmoid(r) pre-activation table
                    z_tab_ref,      # (V, H)  sigmoid(z) pre-activation table
                    n_tab_ref,      # (V, H)  tanh(n) input-part table (no b_hn)
                    bhn_ref,        # (1, H)  b_hn (multiplied by r per PyTorch GRU)
                    out_ref):       # (1, H)  h_new (== outputs step == final hidden)
    tok = tok_ref[0]
    # Gather one (1, H) row per gate via a dynamic slice on the sublane axis.
    r = jax.nn.sigmoid(r_tab_ref[pl.ds(tok, 1), :])
    z = jax.nn.sigmoid(z_tab_ref[pl.ds(tok, 1), :])
    n = jnp.tanh(n_tab_ref[pl.ds(tok, 1), :] + r * bhn_ref[...])
    # h0 = 0  =>  h_new = (1 - z) * n + z * h0 = (1 - z) * n
    out_ref[...] = (1.0 - z) * n


def prepare_encoder_params(emb_table, w_ih, w_hh, b_ih, b_hh):
    """One-time host-side parameter folding (plain JAX, outside the kernel).

    w_hh is accepted for signature parity with the PyTorch module but is unused:
    with h0 = 0 its contribution is exactly zero for this single-step forward.
    """
    del w_hh  # provably dead work for seq=1, h0=0
    emb = jnp.asarray(emb_table, jnp.float32)          # (V, E)
    w_ih = jnp.asarray(w_ih, jnp.float32)              # (3H, E)
    b_ih = jnp.asarray(b_ih, jnp.float32)              # (3H,)
    b_hh = jnp.asarray(b_hh, jnp.float32)              # (3H,)
    H = w_ih.shape[0] // 3

    gi = emb @ w_ih.T + b_ih                           # (V, 3H)
    r_tab = gi[:, 0:H] + b_hh[0:H]                     # (V, H)
    z_tab = gi[:, H:2 * H] + b_hh[H:2 * H]             # (V, H)
    n_tab = gi[:, 2 * H:3 * H]                         # (V, H)  (b_hn kept out)
    b_hn = b_hh[2 * H:3 * H].reshape(1, H)             # (1, H)
    return r_tab, z_tab, n_tab, b_hn


def encoder_forward(src_token, r_tab, z_tab, n_tab, b_hn):
    """src_token: int32 array of shape (1,) — the single token index."""
    V, H = r_tab.shape

    # Full-array blocks (tiny: ~1.6 KiB total), token id via scalar prefetch.
    full = lambda shape: pl.BlockSpec(shape, lambda i, tok: (0, 0))

    h = pl.pallas_call(
        _encoder_kernel,
        out_shape=jax.ShapeDtypeStruct((1, H), jnp.float32),
        grid_spec=pltpu.PrefetchScalarGridSpec(
            num_scalar_prefetch=1,
            grid=(1,),
            in_specs=[
                full((V, H)),   # r_tab
                full((V, H)),   # z_tab
                full((V, H)),   # n_tab
                full((1, H)),   # b_hn
            ],
            out_specs=full((1, H)),
        ),
        compiler_params=pltpu.CompilerParams(
            dimension_semantics=("arbitrary",)),
    )(src_token.astype(jnp.int32), r_tab, z_tab, n_tab, b_hn)

    outputs = h.reshape(1, 1, H)                 # (seq=1, batch=1, H)
    hidden = h.reshape(NUM_LAYERS, 1, H)         # (num_layers, batch=1, H)
    return outputs, hidden


def _reference(src_token, emb_table, w_ih, w_hh, b_ih, b_hh):
    """Pure-JAX reference of the PyTorch forward (unfolded GRU math)."""
    H = HIDDEN_DIM
    x = emb_table[src_token[0]].reshape(1, -1)     # (1, E)
    h0 = jnp.zeros((1, H), jnp.float32)
    gi = x @ w_ih.T + b_ih
    gh = h0 @ w_hh.T + b_hh
    r = jax.nn.sigmoid(gi[:, 0:H] + gh[:, 0:H])
    z = jax.nn.sigmoid(gi[:, H:2 * H] + gh[:, H:2 * H])
    n = jnp.tanh(gi[:, 2 * H:3 * H] + r * gh[:, 2 * H:3 * H])
    h_new = (1.0 - z) * n + z * h0
    return h_new.reshape(1, 1, H), h_new.reshape(NUM_LAYERS, 1, H)


if __name__ == "__main__":
    key = jax.random.PRNGKey(0)
    k_emb, k_wih, k_whh, k_bih, k_bhh, k_tok = jax.random.split(key, 6)

    # Deterministic synthetic parameters (PyTorch-like uniform init scale).
    s = 1.0 / np.sqrt(HIDDEN_DIM)
    emb_table = jax.random.normal(k_emb, (INPUT_DIM, EMBED_DIM), jnp.float32)
    w_ih = jax.random.uniform(k_wih, (3 * HIDDEN_DIM, EMBED_DIM), jnp.float32, -s, s)
    w_hh = jax.random.uniform(k_whh, (3 * HIDDEN_DIM, HIDDEN_DIM), jnp.float32, -s, s)
    b_ih = jax.random.uniform(k_bih, (3 * HIDDEN_DIM,), jnp.float32, -s, s)
    b_hh = jax.random.uniform(k_bhh, (3 * HIDDEN_DIM,), jnp.float32, -s, s)

    # src: a single token index (the module calls .view(1, 1, -1) on its embedding).
    src = jax.random.randint(k_tok, (1,), 0, INPUT_DIM, jnp.int32)

    # One-time parameter folding, then the (tiny) Pallas forward.
    r_tab, z_tab, n_tab, b_hn = prepare_encoder_params(emb_table, w_ih, w_hh, b_ih, b_hh)
    outputs, hidden = encoder_forward(src, r_tab, z_tab, n_tab, b_hn)
    outputs, hidden = jax.block_until_ready((outputs, hidden))

    ref_out, ref_hid = _reference(src, emb_table, w_ih, w_hh, b_ih, b_hh)
    assert outputs.shape == (1, 1, HIDDEN_DIM)
    assert hidden.shape == (NUM_LAYERS, 1, HIDDEN_DIM)
    np.testing.assert_allclose(np.asarray(outputs), np.asarray(ref_out),
                               rtol=1e-5, atol=1e-5)
    np.testing.assert_allclose(np.asarray(hidden), np.asarray(ref_hid),
                               rtol=1e-5, atol=1e-5)

    print("KERNEL_OK")
</pallas_src>

<mosaic_0001>
module attributes {stable_mosaic.version = 11 : i64} {
  func.func @_encoder_kernel(%arg0: i32, %arg1: memref<1xi32, #tpu.memory_space<smem>>, %arg2: memref<16x32xf32, #tpu.memory_space<vmem>>, %arg3: memref<16x32xf32, #tpu.memory_space<vmem>>, %arg4: memref<16x32xf32, #tpu.memory_space<vmem>>, %arg5: memref<1x32xf32, #tpu.memory_space<vmem>>, %arg6: memref<1x32xf32, #tpu.memory_space<vmem>>) attributes {dimension_semantics = [#tpu.dimension_semantics<arbitrary>], iteration_bounds = array<i64: 1>, scalar_prefetch = 1 : i64, scratch_operands = 0 : i64, tpu.core_type = #tpu.core_type<tc>, window_params = [{pipeline_mode = #tpu.pipeline_mode<synchronous>, transform_indices = @transform_0, window_bounds = array<i64: 16, 32>}, {pipeline_mode = #tpu.pipeline_mode<synchronous>, transform_indices = @transform_1, window_bounds = array<i64: 16, 32>}, {pipeline_mode = #tpu.pipeline_mode<synchronous>, transform_indices = @transform_2, window_bounds = array<i64: 16, 32>}, {pipeline_mode = #tpu.pipeline_mode<synchronous>, transform_indices = @transform_3, window_bounds = array<i64: 1, 32>}, {pipeline_mode = #tpu.pipeline_mode<synchronous>, transform_indices = @transform_4, window_bounds = array<i64: 1, 32>}]} {
    %c0 = arith.constant 0 : index
    %0 = memref.load %arg1[%c0] : memref<1xi32, #tpu.memory_space<smem>>
    %1 = arith.index_cast %0 : i32 to index
    %c0_0 = arith.constant 0 : index
    %2 = vector.load %arg2[%1, %c0_0] : memref<16x32xf32, #tpu.memory_space<vmem>>, vector<1x32xf32>
    %3 = arith.negf %2 : vector<1x32xf32>
    %4 = math.exp %3 : vector<1x32xf32>
    %cst = arith.constant 1.000000e+00 : f32
    %5 = vector.broadcast %cst : f32 to vector<1x32xf32>
    %6 = arith.addf %5, %4 : vector<1x32xf32>
    %7 = arith.divf %5, %6 : vector<1x32xf32>
    %8 = arith.index_cast %0 : i32 to index
    %c0_1 = arith.constant 0 : index
    %9 = vector.load %arg3[%8, %c0_1] : memref<16x32xf32, #tpu.memory_space<vmem>>, vector<1x32xf32>
    %10 = arith.negf %9 : vector<1x32xf32>
    %11 = math.exp %10 : vector<1x32xf32>
    %cst_2 = arith.constant 1.000000e+00 : f32
    %12 = vector.broadcast %cst_2 : f32 to vector<1x32xf32>
    %13 = arith.addf %12, %11 : vector<1x32xf32>
    %14 = arith.divf %12, %13 : vector<1x32xf32>
    %15 = arith.index_cast %0 : i32 to index
    %c0_3 = arith.constant 0 : index
    %16 = vector.load %arg4[%15, %c0_3] : memref<16x32xf32, #tpu.memory_space<vmem>>, vector<1x32xf32>
    %c0_4 = arith.constant 0 : index
    %c0_5 = arith.constant 0 : index
    %17 = vector.load %arg5[%c0_4, %c0_5] : memref<1x32xf32, #tpu.memory_space<vmem>>, vector<1x32xf32>
    %18 = arith.mulf %7, %17 : vector<1x32xf32>
    %19 = arith.addf %16, %18 : vector<1x32xf32>
    %20 = math.tanh %19 : vector<1x32xf32>
    %cst_6 = arith.constant 1.000000e+00 : f32
    %21 = vector.broadcast %cst_6 : f32 to vector<1x32xf32>
    %22 = arith.subf %21, %14 : vector<1x32xf32>
    %23 = arith.mulf %22, %20 : vector<1x32xf32>
    %c0_7 = arith.constant 0 : index
    %c0_8 = arith.constant 0 : index
    %24 = vector.load %arg6[%c0_7, %c0_8] : memref<1x32xf32, #tpu.memory_space<vmem>>, vector<1x32xf32>
    tpu.vector_store %arg6[%c0_7, %c0_8], %23 {strides = array<i32>} : memref<1x32xf32, #tpu.memory_space<vmem>>, vector<1x32xf32>,
    return
  }
  func.func @transform_0(%arg0: i32, %arg1: memref<1xi32, #tpu.memory_space<smem>>) -> (i32, i32) {
    %c0_i32 = arith.constant 0 : i32
    %c0_i32_0 = arith.constant 0 : i32
    %c0_i32_1 = arith.constant 0 : i32
    return %c0_i32, %c0_i32_0 : i32, i32
  }
  func.func @transform_1(%arg0: i32, %arg1: memref<1xi32, #tpu.memory_space<smem>>) -> (i32, i32) {
    %c0_i32 = arith.constant 0 : i32
    %c0_i32_0 = arith.constant 0 : i32
    %c0_i32_1 = arith.constant 0 : i32
    return %c0_i32, %c0_i32_0 : i32, i32
  }
  func.func @transform_2(%arg0: i32, %arg1: memref<1xi32, #tpu.memory_space<smem>>) -> (i32, i32) {
    %c0_i32 = arith.constant 0 : i32
    %c0_i32_0 = arith.constant 0 : i32
    %c0_i32_1 = arith.constant 0 : i32
    return %c0_i32, %c0_i32_0 : i32, i32
  }
  func.func @transform_3(%arg0: i32, %arg1: memref<1xi32, #tpu.memory_space<smem>>) -> (i32, i32) {
    %c0_i32 = arith.constant 0 : i32
    %c0_i32_0 = arith.constant 0 : i32
    %c0_i32_1 = arith.constant 0 : i32
    return %c0_i32, %c0_i32_0 : i32, i32
  }
  func.func @transform_4(%arg0: i32, %arg1: memref<1xi32, #tpu.memory_space<smem>>) -> (i32, i32) {
    %c0_i32 = arith.constant 0 : i32
    %c0_i32_0 = arith.constant 0 : i32
    %c0_i32_1 = arith.constant 0 : i32
    return %c0_i32, %c0_i32_0 : i32, i32
  }
}

</mosaic_0001>

<llo_original>
// kernel: tpu_custom_call.1
$region0: #{tpu_custom_call.1}
  #allocation0 [shape = 'u32[]', space=smem, size = 0x4, offset = 0x4, fixed_abs, tag = 'smem constant byte address 0x4 - core index']
  #allocation1 [shape = 'u32[144,128]{1,0:T(1,128)}', space=vmem, size = 0x12000, scoped, tag = 'internal scratch']
  #allocation2 [shape = 's32[1]{0}', space=sflag, size = 0x4, scoped, tag = 'scoped memory for tpu_custom_call.1']
  #allocation3 [shape = 's32[1]{0:T(128)S(6)}', space=smem, size = 0x200, scoped, tag = 'prefetched SMEM operand 0']
  %s0 = inlined_call_operand.<no memory space> [shape: s32[1], index: 0, kind: input, shape index: {}]
  %s1 = inlined_call_operand.hbm [shape: f32[16,32], index: 1, kind: input, shape index: {}]
  %s2 = inlined_call_operand.hbm [shape: f32[16,32], index: 2, kind: input, shape index: {}]
  %s3 = inlined_call_operand.hbm [shape: f32[16,32], index: 3, kind: input, shape index: {}]
  %s4 = inlined_call_operand.vmem [shape: f32[1,32], index: 4, kind: input, shape index: {}]
  %s5 = inlined_call_operand.hbm [shape: f32[1,32], index: 5, kind: output, shape index: {}]
  %s6 = sld [smem:[#allocation0]]
  $region38: #{tpu_custom_call.1} parent=0
    _
  %s8 = ssub.s32 1, %s6
  %s9 = scalar_select 0, %s8, %s6
  %10 = sst [smem:[#allocation3]] %s0
  $region1: #{tpu_custom_call.1} parent=0
    #allocation4 [shape = 'u8[8192]{0}', space=vmem, size = 0x2000, scoped, tag = 'input window, operand 1, single buffered']
    #allocation5 [shape = 's32[1]{0}', space=sflag, size = 0x4, scoped, tag = 'scoped memory for tpu_custom_call.1']
    #allocation6 [shape = 's32[1]{0}', space=sflag, size = 0x4, scoped, tag = 'scoped memory for tpu_custom_call.1']
    #allocation7 [shape = 'u8[8192]{0}', space=vmem, size = 0x2000, scoped, tag = 'input window, operand 2, single buffered']
    #allocation8 [shape = 's32[1]{0}', space=sflag, size = 0x4, scoped, tag = 'scoped memory for tpu_custom_call.1']
    #allocation9 [shape = 'u8[8192]{0}', space=vmem, size = 0x2000, scoped, tag = 'input window, operand 3, single buffered']
    #allocation10 [shape = 'u8[512]{0}', space=vmem, size = 0x400, scoped, tag = 'output window, operand 0, single buffered']
    %11 = vsyncpa [#allocation5], 0
    %12 = vsyncpa [#allocation8], 0
    %13 = vsyncpa [#allocation6], 0
    // Predicated region
    $region2: #{tpu_custom_call.1} parent=1 // pred_check
      _
    $region3: #{tpu_custom_call.1} parent=1 // pred_check_branch
      %15 = sbr.rel (0) target = $region5
    $region4: #{tpu_custom_call.1} parent=1 // pred_region
      %s17 = ssub.s32 256, 256
      %18 = vsyncadd [#allocation5], %s17
      %s19 = sshll.u32 [#allocation4], 4
      %s20 = int_to_ptr.vmem [resolvable:$true] %s19
      %25 = dma.hbm_to_vmem [thread:$0]  %s1, 256, %s20, [#allocation5], 128, 128, 8
    $region5: #{tpu_custom_call.1} parent=1 // pred_fallthru
      _
    // Predicated region
    $region6: #{tpu_custom_call.1} parent=1 // pred_check
      _
    $region7: #{tpu_custom_call.1} parent=1 // pred_check_branch
      %27 = sbr.rel (0) target = $region9
    $region8: #{tpu_custom_call.1} parent=1 // pred_region
      %s29 = ssub.s32 256, 256
      %30 = vsyncadd [#allocation8], %s29
      %s31 = sshll.u32 [#allocation7], 4
      %s32 = int_to_ptr.vmem [resolvable:$true] %s31
      %37 = dma.hbm_to_vmem [thread:$0]  %s2, 256, %s32, [#allocation8], 128, 128, 8
    $region9: #{tpu_custom_call.1} parent=1 // pred_fallthru
      _
    // Predicated region
    $region10: #{tpu_custom_call.1} parent=1 // pred_check
      _
    $region11: #{tpu_custom_call.1} parent=1 // pred_check_branch
      %39 = sbr.rel (0) target = $region13
    $region12: #{tpu_custom_call.1} parent=1 // pred_region
      %s41 = ssub.s32 256, 256
      %42 = vsyncadd [#allocation8], %s41
      %s43 = sshll.u32 [#allocation9], 4
      %s44 = int_to_ptr.vmem [resolvable:$true] %s43
      %49 = dma.hbm_to_vmem [thread:$0]  %s3, 256, %s44, [#allocation8], 128, 128, 8
    $region13: #{tpu_custom_call.1} parent=1 // pred_fallthru
      _
    // Predicated region
    $region14: #{tpu_custom_call.1} parent=1 // pred_check
      _
    $region15: #{tpu_custom_call.1} parent=1 // pred_check_branch
      %51 = sbr.rel (0) target = $region17
    $region16: #{tpu_custom_call.1} parent=1 // pred_region
      _
    $region17: #{tpu_custom_call.1} parent=1 // pred_fallthru
      _
    // Predicated region
    $region18: #{tpu_custom_call.1} parent=1 // pred_check
      _
    $region19: #{tpu_custom_call.1} parent=1 // pred_check_branch
      %53 = sbr.rel (0) target = $region21
    $region20: #{tpu_custom_call.1} parent=1 // pred_region
      %54 = dma.done [#allocation5], 256
    $region21: #{tpu_custom_call.1} parent=1 // pred_fallthru
      _
    // Predicated region
    $region22: #{tpu_custom_call.1} parent=1 // pred_check
      _
    $region23: #{tpu_custom_call.1} parent=1 // pred_check_branch
      %56 = sbr.rel (0) target = $region25
    $region24: #{tpu_custom_call.1} parent=1 // pred_region
      %57 = dma.done [#allocation8], 256
    $region25: #{tpu_custom_call.1} parent=1 // pred_fallthru
      _
    // Predicated region
    $region26: #{tpu_custom_call.1} parent=1 // pred_check
      _
    $region27: #{tpu_custom_call.1} parent=1 // pred_check_branch
      %59 = sbr.rel (0) target = $region29
    $region28: #{tpu_custom_call.1} parent=1 // pred_region
      %60 = dma.done [#allocation8], 256
    $region29: #{tpu_custom_call.1} parent=1 // pred_fallthru
      _
    %s61 = sld [smem:[#allocation3]]
    %s62 = scalar_lea.vmem [#allocation4], %s61
    %v63 = vld [vmem:[%s62] sm:$0x1]
    %v64 = vxor.u32 %v63, 2147483648
    %v65 = vmul.f32 %v64, 1.442695
    %v66 = vpow.pop %v65
    %v67 = vadd.f32 %v66, 1.0
    %v68 = vrcp.pop %v67
    %v69 = vmul.f32 1.0, %v68
    %s70 = scalar_lea.vmem [#allocation7], %s61
    %v71 = vld [vmem:[%s70] sm:$0x1]
    %v72 = vxor.u32 %v71, 2147483648
    %v73 = vmul.f32 %v72, 1.442695
    %v74 = vpow.pop %v73
    %v75 = vadd.f32 %v74, 1.0
    %v76 = vrcp.pop %v75
    %v77 = vmul.f32 1.0, %v76
    %s78 = scalar_lea.vmem [#allocation9], %s61
    %v79 = vld [vmem:[%s78] sm:$0x1]
    %v80 = vld [vmem:[%s4] sm:$0x1]
    %v81 = vmul.f32 %v69, %v80
    %v82 = vadd.f32 %v79, %v81
    %v83 = vtanh.pop %v82
    %v84 = vsub.f32 1.0, %v77
    %v85 = vmul.f32 %v84, %v83
    %vm86 = vcmask 253952
    %87 = vst.msk [vmem:[#allocation10] sm:$0x1] %vm86, %v85
    // Predicated region
    $region30: #{tpu_custom_call.1} parent=1 // pred_check
      _
    $region31: #{tpu_custom_call.1} parent=1 // pred_check_branch
      %89 = sbr.rel (0) target = $region33
    $region32: #{tpu_custom_call.1} parent=1 // pred_region
      %s91 = ssub.s32 16, 16
      %92 = vsyncadd [#allocation6], %s91
      %s94 = sshll.u32 [#allocation10], 4
      %s95 = int_to_ptr.vmem [resolvable:$true] %s94
      %97 = dma.vmem_to_hbm [thread:$0]  %s95, 16, %s5, [#allocation6]
    $region33: #{tpu_custom_call.1} parent=1 // pred_fallthru
      _
    // Predicated region
    $region34: #{tpu_custom_call.1} parent=1 // pred_check
      _
    $region35: #{tpu_custom_call.1} parent=1 // pred_check_branch
      %99 = sbr.rel (0) target = $region37
    $region36: #{tpu_custom_call.1} parent=1 // pred_region
      %100 = dma.done [#allocation6], 16
    $region37: #{tpu_custom_call.1} parent=1 // pred_fallthru
      _
    %101 = vsyncpa [#allocation5], 1
    %102 = vsyncpa [#allocation8], 1
    %103 = vsyncpa [#allocation6], 1

</llo_original>
